<compile_context>
chip_gen: v7x
topology: tpu7x:2x2x1
jax: 0.10.0
libtpu: 0.0.40
codegen_flags: <defaults>
</compile_context>

<pallas_src>
import jax
import jax.numpy as jnp
from jax.experimental import pallas as pl
from jax.experimental.pallas import tpu as pltpu


def _round_up(n, m):
    return ((n + m - 1) // m) * m


def _mlp_kernel(x_ref, w1_ref, b1_ref, w2_ref, b2_ref, w3_ref, b3_ref, o_ref):
    # x_ref : (TB, F) f32      w1_ref: (F, H) bf16    b1_ref: (1, H) f32
    # w2_ref: (H, H) bf16      b2_ref: (1, H) f32
    # w3_ref: (H, 1) bf16      b3_ref: (1, 1) f32 in SMEM
    # o_ref : (TB, 1) f32
    x = x_ref[...].astype(w1_ref.dtype)                     # in-kernel cast (VPU slack)
    h1 = jnp.maximum(
        jnp.dot(x, w1_ref[...], preferred_element_type=jnp.float32) + b1_ref[...],
        0.0,
    ).astype(w2_ref.dtype)                                  # fused bias+ReLU+cast
    h2 = jnp.maximum(
        jnp.dot(h1, w2_ref[...], preferred_element_type=jnp.float32) + b2_ref[...],
        0.0,
    ).astype(w3_ref.dtype)
    # Final layer: N=1 MXU dot (one extra vmatmul pass) instead of an XLU lane-reduce.
    o_ref[...] = (
        jnp.dot(h2, w3_ref[...], preferred_element_type=jnp.float32) + b3_ref[0, 0]
    )


def prepare_params(params, compute_dtype=jnp.bfloat16):
    """One-time param prep (casts/reshapes hoisted out of the per-call wrapper)."""
    w1, b1, w2, b2, w3, b3 = params
    H = w1.shape[1]
    return (
        w1.astype(compute_dtype),                 # (F, H) bf16
        b1.reshape(1, H).astype(jnp.float32),     # (1, H) f32
        w2.astype(compute_dtype),                 # (H, H) bf16
        b2.reshape(1, H).astype(jnp.float32),     # (1, H) f32
        w3.reshape(H, 1).astype(compute_dtype),   # (H, 1) bf16
        b3.reshape(1, 1).astype(jnp.float32),     # (1, 1) f32 (SMEM scalar)
    )


def mlp_forward(x, prepared, *, block_batch=8192):
    """x: (B, src_num_dim) float32 -> squeezed output (torch.squeeze semantics)."""
    w1c, b1, w2c, b2, w3c, b3s = prepared
    B, F = x.shape
    H = w1c.shape[1]                                   # padded hidden (multiple of 128)

    # --- Batch tile selection ---------------------------------------------------
    # Multiple of 8 sublanes (or full extent for tiny B); >= 2 grid steps when the
    # batch allows it, so v7x's two TensorCores both get work (no-op on v5e/v6e).
    if B < 8:
        TB = B                                         # full-extent single tile
    else:
        B_up8 = _round_up(B, 8)
        TB = _round_up(max(8, min(block_batch, B_up8)), 8)
        if B_up8 >= 16:
            TB = min(TB, _round_up(pl.cdiv(B, 2), 8))
    grid = (pl.cdiv(B, TB),)

    isz = 2  # bf16 weight bytes
    flops = 2 * B * (F * H + H * H + H)
    bytes_accessed = (
        B * F * 4                                      # x streamed once as f32
        + F * H * isz + H * H * isz + H * isz          # w1, w2, w3
        + 2 * H * 4 + 4                                # b1, b2, b3
        + B * 4                                        # output
    )

    out = pl.pallas_call(
        _mlp_kernel,
        out_shape=jax.ShapeDtypeStruct((B, 1), jnp.float32),
        grid=grid,
        in_specs=[
            pl.BlockSpec((TB, F), lambda i: (i, 0)),             # x: batch-tiled, f32
            pl.BlockSpec((F, H), lambda i: (0, 0)),              # w1: VMEM-resident
            pl.BlockSpec((1, H), lambda i: (0, 0)),              # b1
            pl.BlockSpec((H, H), lambda i: (0, 0)),              # w2
            pl.BlockSpec((1, H), lambda i: (0, 0)),              # b2
            pl.BlockSpec((H, 1), lambda i: (0, 0)),              # w3 (column)
            pl.BlockSpec(memory_space=pltpu.MemorySpace.SMEM),   # b3 scalar
        ],
        out_specs=pl.BlockSpec((TB, 1), lambda i: (i, 0)),
        compiler_params=pltpu.CompilerParams(
            dimension_semantics=("parallel",),
            vmem_limit_bytes=32 * 1024 * 1024,
        ),
        cost_estimate=pl.CostEstimate(
            flops=flops, transcendentals=0, bytes_accessed=bytes_accessed),
    )(x, w1c, b1, w2c, b2, w3c, b3s)

    # torch.squeeze equivalent.
    return jnp.squeeze(out)


def init_params(key, src_num_dim, hidden):
    """nn.Linear-style U(-1/sqrt(fan_in), +1/sqrt(fan_in)) init.

    Weights stored as (in, out) for the x @ W convention, with the hidden dimension
    zero-padded up to a multiple of 128 (zero weights + zero biases + ReLU(0)=0 keep
    the padded lanes exactly zero, so results are numerically identical)."""
    keys = jax.random.split(key, 6)
    H = _round_up(hidden, 128)

    def linear(kw, kb, fan_in, fan_out):
        bound = 1.0 / jnp.sqrt(fan_in)
        w = jax.random.uniform(kw, (fan_in, fan_out), jnp.float32, -bound, bound)
        b = jax.random.uniform(kb, (1, fan_out), jnp.float32, -bound, bound)
        return w, b

    w1, b1 = linear(keys[0], keys[1], src_num_dim, hidden)
    w2, b2 = linear(keys[2], keys[3], hidden, hidden)
    w3, b3 = linear(keys[4], keys[5], hidden, 1)

    pad_h = H - hidden
    w1 = jnp.pad(w1, ((0, 0), (0, pad_h)))
    b1 = jnp.pad(b1, ((0, 0), (0, pad_h)))
    w2 = jnp.pad(w2, ((0, pad_h), (0, pad_h)))
    b2 = jnp.pad(b2, ((0, 0), (0, pad_h)))
    w3 = jnp.pad(w3, ((0, pad_h), (0, 0)))
    return (w1, b1, w2, b2, w3, b3)


def mlp_reference_f32(x, params):
    """Pure-f32 reference (exact module semantics)."""
    w1, b1, w2, b2, w3, b3 = params
    h1 = jnp.maximum(x @ w1 + b1, 0.0)
    h2 = jnp.maximum(h1 @ w2 + b2, 0.0)
    return jnp.squeeze(h2 @ w3 + b3)


def mlp_reference_mixed(x, params, compute_dtype=jnp.bfloat16):
    """Reference replicating the kernel's precision (bf16 MXU dots, f32 accum)."""
    w1, b1, w2, b2, w3, b3 = params
    cd = compute_dtype
    h1 = jnp.maximum(
        jnp.dot(x.astype(cd), w1.astype(cd), preferred_element_type=jnp.float32) + b1,
        0.0).astype(cd)
    h2 = jnp.maximum(
        jnp.dot(h1, w2.astype(cd), preferred_element_type=jnp.float32) + b2,
        0.0).astype(cd)
    out = jnp.dot(h2, w3.astype(cd), preferred_element_type=jnp.float32) + b3.reshape(1, 1)
    return jnp.squeeze(out)


if __name__ == "__main__":
    SRC_NUM_DIM = 16
    HIDDEN = 50   # module default (padded to 128 internally)
    BATCH = 8

    key = jax.random.PRNGKey(0)
    kx, kp, kx2 = jax.random.split(key, 3)
    params = init_params(kp, SRC_NUM_DIM, HIDDEN)
    prepared = prepare_params(params)          # one-time weight cast/reshape

    # --- small case (single tile) ---
    x = jax.random.normal(kx, (BATCH, SRC_NUM_DIM), jnp.float32)
    y = jax.block_until_ready(mlp_forward(x, prepared))
    assert y.shape == (BATCH,), y.shape

    y_ref_mixed = mlp_reference_mixed(x, params)
    y_ref_f32 = mlp_reference_f32(x, params)
    assert jnp.allclose(y, y_ref_mixed, atol=1e-3, rtol=1e-3), (y, y_ref_mixed)
    assert jnp.allclose(y, y_ref_f32, atol=1e-1, rtol=1e-1), (y, y_ref_f32)

    # --- multi-tile case (exercises grid, ragged last block, parallel semantics) ---
    B2 = 1000
    x2 = jax.random.normal(kx2, (B2, SRC_NUM_DIM), jnp.float32)
    y2 = jax.block_until_ready(mlp_forward(x2, prepared, block_batch=256))
    assert y2.shape == (B2,), y2.shape
    y2_ref = mlp_reference_mixed(x2, params)
    assert jnp.allclose(y2, y2_ref, atol=1e-3, rtol=1e-3)

    # --- default (large) tile path: forces the >=2-grid-step cap on a 1000-row batch ---
    y3 = jax.block_until_ready(mlp_forward(x2, prepared))
    assert jnp.allclose(y3, y2_ref, atol=1e-3, rtol=1e-3)

    print("KERNEL_OK")
</pallas_src>

<mosaic_0001>
module attributes {stable_mosaic.version = 11 : i64} {
  func.func @_mlp_kernel(%arg0: i32, %arg1: memref<8x16xf32, #tpu.memory_space<vmem>>, %arg2: memref<16x128xbf16, #tpu.memory_space<vmem>>, %arg3: memref<1x128xf32, #tpu.memory_space<vmem>>, %arg4: memref<128x128xbf16, #tpu.memory_space<vmem>>, %arg5: memref<1x128xf32, #tpu.memory_space<vmem>>, %arg6: memref<128x1xbf16, #tpu.memory_space<vmem>>, %arg7: memref<1x1xf32, #tpu.memory_space<smem>>, %arg8: memref<8x1xf32, #tpu.memory_space<vmem>>) attributes {dimension_semantics = [#tpu.dimension_semantics<parallel>], iteration_bounds = array<i64: 1>, scalar_prefetch = 0 : i64, scratch_operands = 0 : i64, tpu.core_type = #tpu.core_type<tc>, window_params = [{transform_indices = @transform_0, window_bounds = array<i64: 8, 16>}, {pipeline_mode = #tpu.pipeline_mode<synchronous>, transform_indices = @transform_1, window_bounds = array<i64: 16, 128>}, {pipeline_mode = #tpu.pipeline_mode<synchronous>, transform_indices = @transform_2, window_bounds = array<i64: 1, 128>}, {pipeline_mode = #tpu.pipeline_mode<synchronous>, transform_indices = @transform_3, window_bounds = array<i64: 128, 128>}, {pipeline_mode = #tpu.pipeline_mode<synchronous>, transform_indices = @transform_4, window_bounds = array<i64: 1, 128>}, {pipeline_mode = #tpu.pipeline_mode<synchronous>, transform_indices = @transform_5, window_bounds = array<i64: 128, 1>}, {transform_indices = @transform_6, window_bounds = array<i64: 1, 1>}, {transform_indices = @transform_7, window_bounds = array<i64: 8, 1>}]} {
    %c0 = arith.constant 0 : index
    %c0_0 = arith.constant 0 : index
    %0 = vector.load %arg1[%c0, %c0_0] : memref<8x16xf32, #tpu.memory_space<vmem>>, vector<8x16xf32>
    %1 = arith.truncf %0 : vector<8x16xf32> to vector<8x16xbf16>
    %c0_1 = arith.constant 0 : index
    %c0_2 = arith.constant 0 : index
    %2 = vector.load %arg2[%c0_1, %c0_2] : memref<16x128xbf16, #tpu.memory_space<vmem>>, vector<16x128xbf16>
    %cst = arith.constant dense<0.000000e+00> : vector<8x128xf32>
    %3 = tpu.matmul %1, %2, %cst {dimension_numbers = #tpu.dot_dimension_numbers<[1], [0], [0], [1], [0, 0, 1, 1], [], []>} : vector<8x16xbf16>, vector<16x128xbf16>, vector<8x128xf32> -> vector<8x128xf32>
    %c0_3 = arith.constant 0 : index
    %c0_4 = arith.constant 0 : index
    %4 = vector.load %arg3[%c0_3, %c0_4] : memref<1x128xf32, #tpu.memory_space<vmem>>, vector<1x128xf32>
    %5 = vector.broadcast %4 : vector<1x128xf32> to vector<8x128xf32>
    %6 = arith.addf %3, %5 : vector<8x128xf32>
    %cst_5 = arith.constant 0.000000e+00 : f32
    %7 = vector.broadcast %cst_5 : f32 to vector<8x128xf32>
    %8 = arith.maximumf %6, %7 : vector<8x128xf32>
    %9 = arith.truncf %8 : vector<8x128xf32> to vector<8x128xbf16>
    %c0_6 = arith.constant 0 : index
    %c0_7 = arith.constant 0 : index
    %10 = vector.load %arg4[%c0_6, %c0_7] : memref<128x128xbf16, #tpu.memory_space<vmem>>, vector<128x128xbf16>
    %cst_8 = arith.constant dense<0.000000e+00> : vector<8x128xf32>
    %11 = tpu.matmul %9, %10, %cst_8 {dimension_numbers = #tpu.dot_dimension_numbers<[1], [0], [0], [1], [0, 0, 1, 1], [], []>} : vector<8x128xbf16>, vector<128x128xbf16>, vector<8x128xf32> -> vector<8x128xf32>
    %c0_9 = arith.constant 0 : index
    %c0_10 = arith.constant 0 : index
    %12 = vector.load %arg5[%c0_9, %c0_10] : memref<1x128xf32, #tpu.memory_space<vmem>>, vector<1x128xf32>
    %13 = vector.broadcast %12 : vector<1x128xf32> to vector<8x128xf32>
    %14 = arith.addf %11, %13 : vector<8x128xf32>
    %cst_11 = arith.constant 0.000000e+00 : f32
    %15 = vector.broadcast %cst_11 : f32 to vector<8x128xf32>
    %16 = arith.maximumf %14, %15 : vector<8x128xf32>
    %17 = arith.truncf %16 : vector<8x128xf32> to vector<8x128xbf16>
    %c0_12 = arith.constant 0 : index
    %c0_13 = arith.constant 0 : index
    %18 = vector.load %arg6[%c0_12, %c0_13] : memref<128x1xbf16, #tpu.memory_space<vmem>>, vector<128x1xbf16>
    %cst_14 = arith.constant dense<0.000000e+00> : vector<8x1xf32>
    %19 = tpu.matmul %17, %18, %cst_14 {dimension_numbers = #tpu.dot_dimension_numbers<[1], [0], [0], [1], [0, 0, 1, 1], [], []>} : vector<8x128xbf16>, vector<128x1xbf16>, vector<8x1xf32> -> vector<8x1xf32>
    %c0_15 = arith.constant 0 : index
    %c0_16 = arith.constant 0 : index
    %20 = memref.load %arg7[%c0_15, %c0_16] : memref<1x1xf32, #tpu.memory_space<smem>>
    %21 = vector.broadcast %20 : f32 to vector<8x1xf32>
    %22 = arith.addf %19, %21 : vector<8x1xf32>
    %c0_17 = arith.constant 0 : index
    %c0_18 = arith.constant 0 : index
    %23 = vector.load %arg8[%c0_17, %c0_18] : memref<8x1xf32, #tpu.memory_space<vmem>>, vector<8x1xf32>
    tpu.vector_store %arg8[%c0_17, %c0_18], %22 {strides = array<i32>} : memref<8x1xf32, #tpu.memory_space<vmem>>, vector<8x1xf32>,
    return
  }
  func.func @transform_0(%arg0: i32) -> (i32, i32) {
    %c0_i32 = arith.constant 0 : i32
    %c0_i32_0 = arith.constant 0 : i32
    return %arg0, %c0_i32 : i32, i32
  }
  func.func @transform_1(%arg0: i32) -> (i32, i32) {
    %c0_i32 = arith.constant 0 : i32
    %c0_i32_0 = arith.constant 0 : i32
    %c0_i32_1 = arith.constant 0 : i32
    return %c0_i32, %c0_i32_0 : i32, i32
  }
  func.func @transform_2(%arg0: i32) -> (i32, i32) {
    %c0_i32 = arith.constant 0 : i32
    %c0_i32_0 = arith.constant 0 : i32
    %c0_i32_1 = arith.constant 0 : i32
    return %c0_i32, %c0_i32_0 : i32, i32
  }
  func.func @transform_3(%arg0: i32) -> (i32, i32) {
    %c0_i32 = arith.constant 0 : i32
    %c0_i32_0 = arith.constant 0 : i32
    %c0_i32_1 = arith.constant 0 : i32
    return %c0_i32, %c0_i32_0 : i32, i32
  }
  func.func @transform_4(%arg0: i32) -> (i32, i32) {
    %c0_i32 = arith.constant 0 : i32
    %c0_i32_0 = arith.constant 0 : i32
    %c0_i32_1 = arith.constant 0 : i32
    return %c0_i32, %c0_i32_0 : i32, i32
  }
  func.func @transform_5(%arg0: i32) -> (i32, i32) {
    %c0_i32 = arith.constant 0 : i32
    %c0_i32_0 = arith.constant 0 : i32
    %c0_i32_1 = arith.constant 0 : i32
    return %c0_i32, %c0_i32_0 : i32, i32
  }
  func.func @transform_6(%arg0: i32) -> (i32, i32) {
    %c0_i32 = arith.constant 0 : i32
    %c0_i32_0 = arith.constant 0 : i32
    %c0_i32_1 = arith.constant 0 : i32
    return %c0_i32, %c0_i32_0 : i32, i32
  }
  func.func @transform_7(%arg0: i32) -> (i32, i32) {
    %c0_i32 = arith.constant 0 : i32
    %c0_i32_0 = arith.constant 0 : i32
    return %arg0, %c0_i32 : i32, i32
  }
}

</mosaic_0001>

<llo_original>
// kernel: tpu_custom_call.1
$region0: #{tpu_custom_call.1}
  #allocation0 [shape = 'u32[]', space=smem, size = 0x4, offset = 0x4, fixed_abs, tag = 'smem constant byte address 0x4 - core index']
  #allocation1 [shape = 'u32[144,128]{1,0:T(1,128)}', space=vmem, size = 0x12000, scoped, tag = 'internal scratch']
  #allocation2 [shape = 'f32[1,1]{1,0:T(1,128)S(6)}', space=smem, size = 0x200, scoped, tag = 'scoped memory for tpu_custom_call.1']
  %s0 = inlined_call_operand.vmem [shape: f32[8,16], index: 0, kind: input, shape index: {}]
  %s1 = inlined_call_operand.vmem [shape: bf16[16,128], index: 1, kind: input, shape index: {}]
  %s2 = inlined_call_operand.hbm [shape: f32[1,128], index: 2, kind: input, shape index: {}]
  %s3 = inlined_call_operand.vmem [shape: bf16[128,128], index: 3, kind: input, shape index: {}]
  %s4 = inlined_call_operand.vmem [shape: f32[1,128], index: 4, kind: input, shape index: {}]
  %s5 = inlined_call_operand.vmem [shape: bf16[128,1], index: 5, kind: input, shape index: {}]
  %s6 = inlined_call_operand.<no memory space> [shape: f32[1,1], index: 6, kind: input, shape index: {}]
  %s7 = inlined_call_operand.vmem [shape: f32[8,1], index: 7, kind: output, shape index: {}]
  %s8 = sld [smem:[#allocation0]]
  $region42: #{tpu_custom_call.1} parent=0
    _
  %s10 = ssub.s32 1, %s8
  %s11 = scalar_select 0, %s10, %s8
  %12 = sst [smem:[#allocation2]] %s6
  $region1: #{tpu_custom_call.1} parent=0
    #allocation3 [shape = 'u8[512]{0}', space=vmem, size = 0x400, scoped, tag = 'input window, operand 2, single buffered']
    #allocation4 [shape = 's32[1]{0}', space=sflag, size = 0x4, scoped, tag = 'scoped memory for tpu_custom_call.1']
    %13 = vsyncpa [#allocation4], 0
    // Predicated region
    $region2: #{tpu_custom_call.1} parent=1 // pred_check
      _
    $region3: #{tpu_custom_call.1} parent=1 // pred_check_branch
      %15 = sbr.rel (0) target = $region5
    $region4: #{tpu_custom_call.1} parent=1 // pred_region
      _
    $region5: #{tpu_custom_call.1} parent=1 // pred_fallthru
      _
    // Predicated region
    $region6: #{tpu_custom_call.1} parent=1 // pred_check
      _
    $region7: #{tpu_custom_call.1} parent=1 // pred_check_branch
      %17 = sbr.rel (0) target = $region9
    $region8: #{tpu_custom_call.1} parent=1 // pred_region
      _
    $region9: #{tpu_custom_call.1} parent=1 // pred_fallthru
      _
    // Predicated region
    $region10: #{tpu_custom_call.1} parent=1 // pred_check
      _
    $region11: #{tpu_custom_call.1} parent=1 // pred_check_branch
      %19 = sbr.rel (0) target = $region13
    $region12: #{tpu_custom_call.1} parent=1 // pred_region
      %s21 = ssub.s32 16, 16
      %22 = vsyncadd [#allocation4], %s21
      %s24 = sshll.u32 [#allocation3], 4
      %s25 = int_to_ptr.vmem [resolvable:$true] %s24
      %27 = dma.hbm_to_vmem [thread:$0]  %s2, 16, %s25, [#allocation4]
    $region13: #{tpu_custom_call.1} parent=1 // pred_fallthru
      _
    // Predicated region
    $region14: #{tpu_custom_call.1} parent=1 // pred_check
      _
    $region15: #{tpu_custom_call.1} parent=1 // pred_check_branch
      %29 = sbr.rel (0) target = $region17
    $region16: #{tpu_custom_call.1} parent=1 // pred_region
      _
    $region17: #{tpu_custom_call.1} parent=1 // pred_fallthru
      _
    // Predicated region
    $region18: #{tpu_custom_call.1} parent=1 // pred_check
      _
    $region19: #{tpu_custom_call.1} parent=1 // pred_check_branch
      %31 = sbr.rel (0) target = $region21
    $region20: #{tpu_custom_call.1} parent=1 // pred_region
      _
    $region21: #{tpu_custom_call.1} parent=1 // pred_fallthru
      _
    // Predicated region
    $region22: #{tpu_custom_call.1} parent=1 // pred_check
      _
    $region23: #{tpu_custom_call.1} parent=1 // pred_check_branch
      %33 = sbr.rel (0) target = $region25
    $region24: #{tpu_custom_call.1} parent=1 // pred_region
      _
    $region25: #{tpu_custom_call.1} parent=1 // pred_fallthru
      _
    // Predicated region
    $region26: #{tpu_custom_call.1} parent=1 // pred_check
      _
    $region27: #{tpu_custom_call.1} parent=1 // pred_check_branch
      %35 = sbr.rel (0) target = $region29
    $region28: #{tpu_custom_call.1} parent=1 // pred_region
      _
    $region29: #{tpu_custom_call.1} parent=1 // pred_fallthru
      _
    // Predicated region
    $region30: #{tpu_custom_call.1} parent=1 // pred_check
      _
    $region31: #{tpu_custom_call.1} parent=1 // pred_check_branch
      %37 = sbr.rel (0) target = $region33
    $region32: #{tpu_custom_call.1} parent=1 // pred_region
      %38 = dma.done [#allocation4], 16
    $region33: #{tpu_custom_call.1} parent=1 // pred_fallthru
      _
    %v40 = vld [vmem:[%s0] sm:$0xff]
    %v41 = vpack.c.bf16 %v40, %v40
    %v42 = vld [vmem:[%s1] sm:$0xf]
    %v43 = vld [vmem:[%s1 + $0x4] sm:$0xf]
    %v44 = vld [vmem:[#allocation3] sm:$0x1]
    %v46 = vlaneseq
    %v47 = vshrl.u32 %v46, 7
    %v48 = vsub.s32 0, %v47
    %v49 = vrot.slane %v44, %v48
    %v53 = vunpack.c.l.b16 %v42
    %v54 = vunpack.c.l.b16 %v43
    %v55 = vpack.c.b16 %v54, %v53
    %vm57 = vcmask 130048
    %v59 = vsel %vm57, %v41, 0
    %61 = vmatprep.subr.bf16.mxu0 0
    %62 = vmatpush1.bf16.msra.mxu0 %v55
    %63 = vmatprep.subr.bf16.mxu0 0
    %64 = vmatpush1.bf16.msra.mxu0 0
    %65 = vmatprep.subr.bf16.mxu0 0
    %66 = vmatpush1.bf16.msra.mxu0 0
    %67 = vmatprep.subr.bf16.mxu0 0
    %68 = vmatpush1.bf16.msra.mxu0 0
    %69 = vmatprep.subr.bf16.mxu0 0
    %70 = vmatpush1.bf16.msra.mxu0 0
    %71 = vmatprep.subr.bf16.mxu0 0
    %72 = vmatpush1.bf16.msra.mxu0 0
    %73 = vmatprep.subr.bf16.mxu0 0
    %74 = vmatpush1.bf16.msra.mxu0 0
    %75 = vmatprep.subr.bf16.mxu0 0
    %76 = vmatpush1.bf16.msra.mxu0 0
    %77 = vmatprep.subr.bf16.mxu0 0
    %78 = vmatpush1.bf16.msra.mxu0 0
    %79 = vmatprep.subr.bf16.mxu0 0
    %80 = vmatpush1.bf16.msra.mxu0 0
    %81 = vmatprep.subr.bf16.mxu0 0
    %82 = vmatpush1.bf16.msra.mxu0 0
    %83 = vmatprep.subr.bf16.mxu0 0
    %84 = vmatpush1.bf16.msra.mxu0 0
    %85 = vmatprep.subr.bf16.mxu0 0
    %86 = vmatpush1.bf16.msra.mxu0 0
    %87 = vmatprep.subr.bf16.mxu0 0
    %88 = vmatpush1.bf16.msra.mxu0 0
    %89 = vmatprep.subr.bf16.mxu0 0
    %90 = vmatpush1.bf16.msra.mxu0 0
    %91 = vmatprep.subr.bf16.mxu0 0
    %92 = vmatpush1.bf16.msra.mxu0 0
    %93 = vmatprep.mubr.bf16.mxu0 0
    %94 = vmatmul.mubr.bf16.gmra.mrb[0].mxu0 %v59
    %v95 = vpop.f32.mrb[0].mxu0
    %v96 = vadd.f32 %v49, %v95
    %v97 = vpop.f32.mrb[0].mxu0
    %v98 = vpop.f32.mrb[0].mxu0
    %v99 = vpop.f32.mrb[0].mxu0
    %100 = vdwg.mxu0
    %v101 = vmax.f32 %v96, 0.0
    %v102 = vpack.c.bf16 %v101, %v101
    %v103 = vld [vmem:[%s3] sm:$0xf]
    %v104 = vld [vmem:[%s3 + $0x4] sm:$0xf]
    %v105 = vld [vmem:[%s3 + $0x8] sm:$0xf]
    %v106 = vld [vmem:[%s3 + $0xc] sm:$0xf]
    %v107 = vld [vmem:[%s3 + $0x10] sm:$0xf]
    %v108 = vld [vmem:[%s3 + $0x14] sm:$0xf]
    %v109 = vld [vmem:[%s3 + $0x18] sm:$0xf]
    %v110 = vld [vmem:[%s3 + $0x1c] sm:$0xf]
    %v111 = vld [vmem:[%s3 + $0x20] sm:$0xf]
    %v112 = vld [vmem:[%s3 + $0x24] sm:$0xf]
    %v113 = vld [vmem:[%s3 + $0x28] sm:$0xf]
    %v114 = vld [vmem:[%s3 + $0x2c] sm:$0xf]
    %v115 = vld [vmem:[%s3 + $0x30] sm:$0xf]
    %v116 = vld [vmem:[%s3 + $0x34] sm:$0xf]
    %v117 = vld [vmem:[%s3 + $0x38] sm:$0xf]
    %v118 = vld [vmem:[%s3 + $0x3c] sm:$0xf]
    %v119 = vld [vmem:[%s4] sm:$0x1]
    %v121 = vlaneseq
    %v122 = vshrl.u32 %v121, 7
    %v123 = vsub.s32 0, %v122
    %v124 = vrot.slane %v119, %v123
    %v142 = vunpack.c.l.b16 %v103
    %v143 = vunpack.c.l.b16 %v104
    %v144 = vunpack.c.l.b16 %v105
    %v145 = vunpack.c.l.b16 %v106
    %v146 = vunpack.c.l.b16 %v107
    %v147 = vunpack.c.l.b16 %v108
    %v148 = vunpack.c.l.b16 %v109
    %v149 = vunpack.c.l.b16 %v110
    %v150 = vunpack.c.l.b16 %v111
    %v151 = vunpack.c.l.b16 %v112
    %v152 = vunpack.c.l.b16 %v113
    %v153 = vunpack.c.l.b16 %v114
    %v154 = vunpack.c.l.b16 %v115
    %v155 = vunpack.c.l.b16 %v116
    %v156 = vunpack.c.l.b16 %v117
    %v157 = vunpack.c.l.b16 %v118
    %v158 = vpack.c.b16 %v143, %v142
    %v159 = vpack.c.b16 %v145, %v144
    %v160 = vpack.c.b16 %v147, %v146
    %v161 = vpack.c.b16 %v149, %v148
    %v162 = vpack.c.b16 %v151, %v150
    %v163 = vpack.c.b16 %v153, %v152
    %v164 = vpack.c.b16 %v155, %v154
    %v165 = vpack.c.b16 %v157, %v156
    %174 = vmatprep.subr.bf16.mxu0 0
    %175 = vmatpush1.bf16.msra.mxu0 %v158
    %176 = vmatprep.subr.bf16.mxu0 0
    %177 = vmatpush1.bf16.msra.mxu0 %v159
    %178 = vmatprep.subr.bf16.mxu0 0
    %179 = vmatpush1.bf16.msra.mxu0 %v160
    %180 = vmatprep.subr.bf16.mxu0 0
    %181 = vmatpush1.bf16.msra.mxu0 %v161
    %182 = vmatprep.subr.bf16.mxu0 0
    %183 = vmatpush1.bf16.msra.mxu0 %v162
    %184 = vmatprep.subr.bf16.mxu0 0
    %185 = vmatpush1.bf16.msra.mxu0 %v163
    %186 = vmatprep.subr.bf16.mxu0 0
    %187 = vmatpush1.bf16.msra.mxu0 %v164
    %188 = vmatprep.subr.bf16.mxu0 0
    %189 = vmatpush1.bf16.msra.mxu0 %v165
    %190 = vmatprep.subr.bf16.mxu0 0
    %191 = vmatpush1.bf16.msra.mxu0 0
    %192 = vmatprep.subr.bf16.mxu0 0
    %193 = vmatpush1.bf16.msra.mxu0 0
    %194 = vmatprep.subr.bf16.mxu0 0
    %195 = vmatpush1.bf16.msra.mxu0 0
    %196 = vmatprep.subr.bf16.mxu0 0
    %197 = vmatpush1.bf16.msra.mxu0 0
    %198 = vmatprep.subr.bf16.mxu0 0
    %199 = vmatpush1.bf16.msra.mxu0 0
    %200 = vmatprep.subr.bf16.mxu0 0
    %201 = vmatpush1.bf16.msra.mxu0 0
    %202 = vmatprep.subr.bf16.mxu0 0
    %203 = vmatpush1.bf16.msra.mxu0 0
    %204 = vmatprep.subr.bf16.mxu0 0
    %205 = vmatpush1.bf16.msra.mxu0 0
    %206 = vmatprep.mubr.bf16.mxu0 0
    %207 = vmatmul.mubr.bf16.gmra.mrb[0].mxu0 %v102
    %v208 = vpop.f32.mrb[0].mxu0
    %v209 = vadd.f32 %v124, %v208
    %v210 = vpop.f32.mrb[0].mxu0
    %v211 = vpop.f32.mrb[0].mxu0
    %v212 = vpop.f32.mrb[0].mxu0
    %213 = vdwg.mxu0
    %v214 = vmax.f32 %v209, 0.0
    %v215 = vpack.c.bf16 %v214, %v214
    %v216 = vld [vmem:[%s5] sm:$0xf]
    %v217 = vld [vmem:[%s5 + $0x4] sm:$0xf]
    %v218 = vld [vmem:[%s5 + $0x8] sm:$0xf]
    %v219 = vld [vmem:[%s5 + $0xc] sm:$0xf]
    %v220 = vld [vmem:[%s5 + $0x10] sm:$0xf]
    %v221 = vld [vmem:[%s5 + $0x14] sm:$0xf]
    %v222 = vld [vmem:[%s5 + $0x18] sm:$0xf]
    %v223 = vld [vmem:[%s5 + $0x1c] sm:$0xf]
    %v224 = vld [vmem:[%s5 + $0x20] sm:$0xf]
    %v225 = vld [vmem:[%s5 + $0x24] sm:$0xf]
    %v226 = vld [vmem:[%s5 + $0x28] sm:$0xf]
    %v227 = vld [vmem:[%s5 + $0x2c] sm:$0xf]
    %v228 = vld [vmem:[%s5 + $0x30] sm:$0xf]
    %v229 = vld [vmem:[%s5 + $0x34] sm:$0xf]
    %v230 = vld [vmem:[%s5 + $0x38] sm:$0xf]
    %v231 = vld [vmem:[%s5 + $0x3c] sm:$0xf]
    %s232 = sld [smem:[#allocation2]]
    %v233 = vstv %s232
    %v250 = vunpack.c.l.b16 %v216
    %v251 = vunpack.c.l.b16 %v217
    %v252 = vunpack.c.l.b16 %v218
    %v253 = vunpack.c.l.b16 %v219
    %v254 = vunpack.c.l.b16 %v220
    %v255 = vunpack.c.l.b16 %v221
    %v256 = vunpack.c.l.b16 %v222
    %v257 = vunpack.c.l.b16 %v223
    %v258 = vunpack.c.l.b16 %v224
    %v259 = vunpack.c.l.b16 %v225
    %v260 = vunpack.c.l.b16 %v226
    %v261 = vunpack.c.l.b16 %v227
    %v262 = vunpack.c.l.b16 %v228
    %v263 = vunpack.c.l.b16 %v229
    %v264 = vunpack.c.l.b16 %v230
    %v265 = vunpack.c.l.b16 %v231
    %v266 = vpack.c.b16 %v251, %v250
    %v267 = vpack.c.b16 %v253, %v252
    %v268 = vpack.c.b16 %v255, %v254
    %v269 = vpack.c.b16 %v257, %v256
    %v270 = vpack.c.b16 %v259, %v258
    %v271 = vpack.c.b16 %v261, %v260
    %v272 = vpack.c.b16 %v263, %v262
    %v273 = vpack.c.b16 %v265, %v264
    %282 = vmatprep.subr.bf16.mxu0 0
    %283 = vmatpush1.bf16.msra.mxu0 %v266
    %284 = vmatprep.subr.bf16.mxu0 0
    %285 = vmatpush1.bf16.msra.mxu0 %v267
    %286 = vmatprep.subr.bf16.mxu0 0
    %287 = vmatpush1.bf16.msra.mxu0 %v268
    %288 = vmatprep.subr.bf16.mxu0 0
    %289 = vmatpush1.bf16.msra.mxu0 %v269
    %290 = vmatprep.subr.bf16.mxu0 0
    %291 = vmatpush1.bf16.msra.mxu0 %v270
    %292 = vmatprep.subr.bf16.mxu0 0
    %293 = vmatpush1.bf16.msra.mxu0 %v271
    %294 = vmatprep.subr.bf16.mxu0 0
    %295 = vmatpush1.bf16.msra.mxu0 %v272
    %296 = vmatprep.subr.bf16.mxu0 0
    %297 = vmatpush1.bf16.msra.mxu0 %v273
    %298 = vmatprep.subr.bf16.mxu0 0
    %299 = vmatpush1.bf16.msra.mxu0 0
    %300 = vmatprep.subr.bf16.mxu0 0
    %301 = vmatpush1.bf16.msra.mxu0 0
    %302 = vmatprep.subr.bf16.mxu0 0
    %303 = vmatpush1.bf16.msra.mxu0 0
    %304 = vmatprep.subr.bf16.mxu0 0
    %305 = vmatpush1.bf16.msra.mxu0 0
    %306 = vmatprep.subr.bf16.mxu0 0
    %307 = vmatpush1.bf16.msra.mxu0 0
    %308 = vmatprep.subr.bf16.mxu0 0
    %309 = vmatpush1.bf16.msra.mxu0 0
    %310 = vmatprep.subr.bf16.mxu0 0
    %311 = vmatpush1.bf16.msra.mxu0 0
    %312 = vmatprep.subr.bf16.mxu0 0
    %313 = vmatpush1.bf16.msra.mxu0 0
    %314 = vmatprep.mubr.bf16.mxu0 0
    %315 = vmatmul.mubr.bf16.gmra.mrb[0].mxu0 %v215
    %v316 = vpop.f32.mrb[0].mxu0
    %v317 = vadd.f32 %v233, %v316
    %v318 = vpop.f32.mrb[0].mxu0
    %v319 = vpop.f32.mrb[0].mxu0
    %v320 = vpop.f32.mrb[0].mxu0
    %321 = vdwg.mxu0
    %vm322 = vcmask 7168
    %323 = vst.msk [vmem:[%s7] sm:$0xff] %vm322, %v317
    // Predicated region
    $region34: #{tpu_custom_call.1} parent=1 // pred_check
      _
    $region35: #{tpu_custom_call.1} parent=1 // pred_check_branch
      %325 = sbr.rel (0) target = $region37
    $region36: #{tpu_custom_call.1} parent=1 // pred_region
      _
    $region37: #{tpu_custom_call.1} parent=1 // pred_fallthru
      _
    // Predicated region
    $region38: #{tpu_custom_call.1} parent=1 // pred_check
      _
    $region39: #{tpu_custom_call.1} parent=1 // pred_check_branch
      %327 = sbr.rel (0) target = $region41
    $region40: #{tpu_custom_call.1} parent=1 // pred_region
      _
    $region41: #{tpu_custom_call.1} parent=1 // pred_fallthru
      _
    %328 = vsyncpa [#allocation4], 1

</llo_original>
